<compile_context>
chip_gen: v7x
topology: tpu7x:2x2x1
jax: 0.10.0
libtpu: 0.0.40
codegen_flags: <defaults>
</compile_context>

<pallas_src>
import jax
import jax.numpy as jnp
from jax.experimental import pallas as pl
from jax.experimental.pallas import tpu as pltpu

NOISE_SIZE = 8
NH = [24, 24, 24]
NOUT = 2
OUT_PAD = 128          # lane-dense padded output width
NEG_SLOPE = 0.01       # torch.nn.LeakyReLU default


def _leaky_relu(x):
    # f32 compare/select on the VPU (cheap; MXU/DMA are the binding units).
    return jnp.where(x > 0, x, NEG_SLOPE * x)


def gan_generator_kernel(z_ref,
                         w1_ref, b1_ref,
                         w2_ref, b2_ref,
                         w3_ref, b3_ref,
                         w4_ref, b4_ref,
                         out_ref):
    """Full forward pass for one batch tile: 4x (bf16 matmul, f32 acc) + bias,
    3x LeakyReLU in f32. The final layer has no activation (net.pop())."""
    h = z_ref[...].astype(jnp.bfloat16)                                   # (tb, 8)

    h = jnp.dot(h, w1_ref[...], preferred_element_type=jnp.float32) + b1_ref[...]
    h = _leaky_relu(h).astype(jnp.bfloat16)                               # (tb, 24)

    h = jnp.dot(h, w2_ref[...], preferred_element_type=jnp.float32) + b2_ref[...]
    h = _leaky_relu(h).astype(jnp.bfloat16)                               # (tb, 24)

    h = jnp.dot(h, w3_ref[...], preferred_element_type=jnp.float32) + b3_ref[...]
    h = _leaky_relu(h).astype(jnp.bfloat16)                               # (tb, 24)

    h = jnp.dot(h, w4_ref[...], preferred_element_type=jnp.float32) + b4_ref[...]
    out_ref[...] = h                                                      # (tb, 128) f32, lane-dense


def init_params(key, layers):
    """Deterministic init mimicking nn.Linear defaults
    (U[-1/sqrt(fan_in), +1/sqrt(fan_in)]). Weights stored as (in, out) = torch W.T."""
    params = []
    for l1, l2 in zip(layers, layers[1:]):
        key, kw, kb = jax.random.split(key, 3)
        bound = 1.0 / jnp.sqrt(jnp.float32(l1))
        w = jax.random.uniform(kw, (l1, l2), jnp.float32, -bound, bound)
        b = jax.random.uniform(kb, (1, l2), jnp.float32, -bound, bound)
        params.append((w, b))
    return params


def prepare_params(params):
    """One-time host-side prep: cast weights to bf16 for the MXU, keep biases f32,
    and zero-pad the final layer to OUT_PAD output features for lane-dense stores."""
    prepped = []
    last = len(params) - 1
    for i, (w, b) in enumerate(params):
        if i == last:
            wp = jnp.zeros((w.shape[0], OUT_PAD), jnp.float32).at[:, :w.shape[1]].set(w)
            bp = jnp.zeros((1, OUT_PAD), jnp.float32).at[:, :b.shape[1]].set(b)
            prepped.append((wp.astype(jnp.bfloat16), bp))
        else:
            prepped.append((w.astype(jnp.bfloat16), b))
    return prepped


def _round_up(x, m):
    return ((x + m - 1) // m) * m


def _pick_tile_b(n, cap=1024):
    """Batch tile: multiple of 8, <= cap, and (when the batch is big enough)
    small enough to leave >=2 grid steps so the parallel grid axis can shard
    across v7x's two TensorCores."""
    if n < 16:
        return max(8, _round_up(n, 8))
    return min(cap, _round_up((n + 1) // 2, 8))


def gan_generator_forward(z, prepped_params, *, tile_b=None):
    n, d = z.shape
    assert d == NOISE_SIZE
    if tile_b is None:
        tile_b = _pick_tile_b(n)
    assert tile_b % 8 == 0, "tile_b must be a multiple of 8 (sublane alignment)"

    # Pad the batch so the grid divides evenly; slice the result back afterwards.
    n_pad = _round_up(n, tile_b)
    if n_pad != n:
        z = jnp.pad(z, ((0, n_pad - n), (0, 0)))

    flat_args = []
    in_specs = [pl.BlockSpec((tile_b, NOISE_SIZE), lambda i: (i, 0))]
    for w, b in prepped_params:
        flat_args.extend([w, b])
        # Full-array blocks, constant index_map -> weights stay resident in VMEM.
        in_specs.append(pl.BlockSpec(w.shape, lambda i: (0, 0)))
        in_specs.append(pl.BlockSpec(b.shape, lambda i: (0, 0)))

    out_padded = pl.pallas_call(
        gan_generator_kernel,
        out_shape=jax.ShapeDtypeStruct((n_pad, OUT_PAD), jnp.float32),
        grid_spec=pl.GridSpec(
            grid=(n_pad // tile_b,),
            in_specs=in_specs,
            out_specs=pl.BlockSpec((tile_b, OUT_PAD), lambda i: (i, 0)),
        ),
        compiler_params=pltpu.CompilerParams(
            dimension_semantics=("parallel",),
        ),
    )(z, *flat_args)

    # Wrapper-side slice back to the true batch / output width.
    return out_padded[:n, :NOUT]


def reference_forward(z, params):
    """Pure-JAX f32 reference matching the PyTorch module."""
    h = z
    for i, (w, b) in enumerate(params):
        h = h @ w + b
        if i < len(params) - 1:
            h = jnp.where(h > 0, h, NEG_SLOPE * h)
    return h


if __name__ == "__main__":
    key = jax.random.PRNGKey(0)
    k_param, k_z = jax.random.split(key)

    layers = [NOISE_SIZE] + NH + [NOUT]
    params = init_params(k_param, layers)      # f32 reference params
    prepped = prepare_params(params)           # bf16 weights, padded last layer

    batch = 32
    z = jax.random.normal(k_z, (batch, NOISE_SIZE), jnp.float32)

    out = gan_generator_forward(z, prepped)    # tile_b=16 -> 2 parallel grid steps
    out = jax.block_until_ready(out)

    ref = reference_forward(z, params)
    assert out.shape == (batch, NOUT), out.shape
    # bf16 MXU inputs (f32 accumulation) -> tolerance relaxed vs strict f32.
    assert jnp.allclose(out, ref, atol=5e-2, rtol=5e-2), "mismatch vs reference"

    print("KERNEL_OK")
</pallas_src>

<mosaic_0001>
module attributes {stable_mosaic.version = 11 : i64} {
  func.func @gan_generator_kernel(%arg0: i32, %arg1: memref<16x8xf32, #tpu.memory_space<vmem>>, %arg2: memref<8x24xbf16, #tpu.memory_space<vmem>>, %arg3: memref<1x24xf32, #tpu.memory_space<vmem>>, %arg4: memref<24x24xbf16, #tpu.memory_space<vmem>>, %arg5: memref<1x24xf32, #tpu.memory_space<vmem>>, %arg6: memref<24x24xbf16, #tpu.memory_space<vmem>>, %arg7: memref<1x24xf32, #tpu.memory_space<vmem>>, %arg8: memref<24x128xbf16, #tpu.memory_space<vmem>>, %arg9: memref<1x128xf32, #tpu.memory_space<vmem>>, %arg10: memref<16x128xf32, #tpu.memory_space<vmem>>) attributes {dimension_semantics = [#tpu.dimension_semantics<parallel>], iteration_bounds = array<i64: 2>, scalar_prefetch = 0 : i64, scratch_operands = 0 : i64, tpu.core_type = #tpu.core_type<tc>, window_params = [{transform_indices = @transform_0, window_bounds = array<i64: 16, 8>}, {pipeline_mode = #tpu.pipeline_mode<synchronous>, transform_indices = @transform_1, window_bounds = array<i64: 8, 24>}, {pipeline_mode = #tpu.pipeline_mode<synchronous>, transform_indices = @transform_2, window_bounds = array<i64: 1, 24>}, {pipeline_mode = #tpu.pipeline_mode<synchronous>, transform_indices = @transform_3, window_bounds = array<i64: 24, 24>}, {pipeline_mode = #tpu.pipeline_mode<synchronous>, transform_indices = @transform_4, window_bounds = array<i64: 1, 24>}, {pipeline_mode = #tpu.pipeline_mode<synchronous>, transform_indices = @transform_5, window_bounds = array<i64: 24, 24>}, {pipeline_mode = #tpu.pipeline_mode<synchronous>, transform_indices = @transform_6, window_bounds = array<i64: 1, 24>}, {pipeline_mode = #tpu.pipeline_mode<synchronous>, transform_indices = @transform_7, window_bounds = array<i64: 24, 128>}, {pipeline_mode = #tpu.pipeline_mode<synchronous>, transform_indices = @transform_8, window_bounds = array<i64: 1, 128>}, {transform_indices = @transform_9, window_bounds = array<i64: 16, 128>}]} {
    %c0 = arith.constant 0 : index
    %c0_0 = arith.constant 0 : index
    %0 = vector.load %arg1[%c0, %c0_0] : memref<16x8xf32, #tpu.memory_space<vmem>>, vector<16x8xf32>
    %1 = arith.truncf %0 : vector<16x8xf32> to vector<16x8xbf16>
    %c0_1 = arith.constant 0 : index
    %c0_2 = arith.constant 0 : index
    %2 = vector.load %arg2[%c0_1, %c0_2] : memref<8x24xbf16, #tpu.memory_space<vmem>>, vector<8x24xbf16>
    %cst = arith.constant dense<0.000000e+00> : vector<16x24xf32>
    %3 = tpu.matmul %1, %2, %cst {dimension_numbers = #tpu.dot_dimension_numbers<[1], [0], [0], [1], [0, 0, 1, 1], [], []>} : vector<16x8xbf16>, vector<8x24xbf16>, vector<16x24xf32> -> vector<16x24xf32>
    %c0_3 = arith.constant 0 : index
    %c0_4 = arith.constant 0 : index
    %4 = vector.load %arg3[%c0_3, %c0_4] : memref<1x24xf32, #tpu.memory_space<vmem>>, vector<1x24xf32>
    %5 = vector.broadcast %4 : vector<1x24xf32> to vector<16x24xf32>
    %6 = arith.addf %3, %5 : vector<16x24xf32>
    %cst_5 = arith.constant 0.000000e+00 : f32
    %7 = vector.broadcast %cst_5 : f32 to vector<16x24xf32>
    %8 = arith.cmpf ogt, %6, %7 : vector<16x24xf32>
    %cst_6 = arith.constant 0.00999999977 : f32
    %9 = vector.broadcast %cst_6 : f32 to vector<16x24xf32>
    %10 = arith.mulf %9, %6 : vector<16x24xf32>
    %11 = arith.select %8, %6, %10 : vector<16x24xi1>, vector<16x24xf32>
    %12 = arith.truncf %11 : vector<16x24xf32> to vector<16x24xbf16>
    %c0_7 = arith.constant 0 : index
    %c0_8 = arith.constant 0 : index
    %13 = vector.load %arg4[%c0_7, %c0_8] : memref<24x24xbf16, #tpu.memory_space<vmem>>, vector<24x24xbf16>
    %cst_9 = arith.constant dense<0.000000e+00> : vector<16x24xf32>
    %14 = tpu.matmul %12, %13, %cst_9 {dimension_numbers = #tpu.dot_dimension_numbers<[1], [0], [0], [1], [0, 0, 1, 1], [], []>} : vector<16x24xbf16>, vector<24x24xbf16>, vector<16x24xf32> -> vector<16x24xf32>
    %c0_10 = arith.constant 0 : index
    %c0_11 = arith.constant 0 : index
    %15 = vector.load %arg5[%c0_10, %c0_11] : memref<1x24xf32, #tpu.memory_space<vmem>>, vector<1x24xf32>
    %16 = vector.broadcast %15 : vector<1x24xf32> to vector<16x24xf32>
    %17 = arith.addf %14, %16 : vector<16x24xf32>
    %cst_12 = arith.constant 0.000000e+00 : f32
    %18 = vector.broadcast %cst_12 : f32 to vector<16x24xf32>
    %19 = arith.cmpf ogt, %17, %18 : vector<16x24xf32>
    %cst_13 = arith.constant 0.00999999977 : f32
    %20 = vector.broadcast %cst_13 : f32 to vector<16x24xf32>
    %21 = arith.mulf %20, %17 : vector<16x24xf32>
    %22 = arith.select %19, %17, %21 : vector<16x24xi1>, vector<16x24xf32>
    %23 = arith.truncf %22 : vector<16x24xf32> to vector<16x24xbf16>
    %c0_14 = arith.constant 0 : index
    %c0_15 = arith.constant 0 : index
    %24 = vector.load %arg6[%c0_14, %c0_15] : memref<24x24xbf16, #tpu.memory_space<vmem>>, vector<24x24xbf16>
    %cst_16 = arith.constant dense<0.000000e+00> : vector<16x24xf32>
    %25 = tpu.matmul %23, %24, %cst_16 {dimension_numbers = #tpu.dot_dimension_numbers<[1], [0], [0], [1], [0, 0, 1, 1], [], []>} : vector<16x24xbf16>, vector<24x24xbf16>, vector<16x24xf32> -> vector<16x24xf32>
    %c0_17 = arith.constant 0 : index
    %c0_18 = arith.constant 0 : index
    %26 = vector.load %arg7[%c0_17, %c0_18] : memref<1x24xf32, #tpu.memory_space<vmem>>, vector<1x24xf32>
    %27 = vector.broadcast %26 : vector<1x24xf32> to vector<16x24xf32>
    %28 = arith.addf %25, %27 : vector<16x24xf32>
    %cst_19 = arith.constant 0.000000e+00 : f32
    %29 = vector.broadcast %cst_19 : f32 to vector<16x24xf32>
    %30 = arith.cmpf ogt, %28, %29 : vector<16x24xf32>
    %cst_20 = arith.constant 0.00999999977 : f32
    %31 = vector.broadcast %cst_20 : f32 to vector<16x24xf32>
    %32 = arith.mulf %31, %28 : vector<16x24xf32>
    %33 = arith.select %30, %28, %32 : vector<16x24xi1>, vector<16x24xf32>
    %34 = arith.truncf %33 : vector<16x24xf32> to vector<16x24xbf16>
    %c0_21 = arith.constant 0 : index
    %c0_22 = arith.constant 0 : index
    %35 = vector.load %arg8[%c0_21, %c0_22] : memref<24x128xbf16, #tpu.memory_space<vmem>>, vector<24x128xbf16>
    %cst_23 = arith.constant dense<0.000000e+00> : vector<16x128xf32>
    %36 = tpu.matmul %34, %35, %cst_23 {dimension_numbers = #tpu.dot_dimension_numbers<[1], [0], [0], [1], [0, 0, 1, 1], [], []>} : vector<16x24xbf16>, vector<24x128xbf16>, vector<16x128xf32> -> vector<16x128xf32>
    %c0_24 = arith.constant 0 : index
    %c0_25 = arith.constant 0 : index
    %37 = vector.load %arg9[%c0_24, %c0_25] : memref<1x128xf32, #tpu.memory_space<vmem>>, vector<1x128xf32>
    %38 = vector.broadcast %37 : vector<1x128xf32> to vector<16x128xf32>
    %39 = arith.addf %36, %38 : vector<16x128xf32>
    %c0_26 = arith.constant 0 : index
    %c0_27 = arith.constant 0 : index
    %40 = vector.load %arg10[%c0_26, %c0_27] : memref<16x128xf32, #tpu.memory_space<vmem>>, vector<16x128xf32>
    tpu.vector_store %arg10[%c0_26, %c0_27], %39 {strides = array<i32>} : memref<16x128xf32, #tpu.memory_space<vmem>>, vector<16x128xf32>,
    return
  }
  func.func @transform_0(%arg0: i32) -> (i32, i32) {
    %c0_i32 = arith.constant 0 : i32
    %c0_i32_0 = arith.constant 0 : i32
    return %arg0, %c0_i32 : i32, i32
  }
  func.func @transform_1(%arg0: i32) -> (i32, i32) {
    %c0_i32 = arith.constant 0 : i32
    %c0_i32_0 = arith.constant 0 : i32
    %c0_i32_1 = arith.constant 0 : i32
    return %c0_i32, %c0_i32_0 : i32, i32
  }
  func.func @transform_2(%arg0: i32) -> (i32, i32) {
    %c0_i32 = arith.constant 0 : i32
    %c0_i32_0 = arith.constant 0 : i32
    %c0_i32_1 = arith.constant 0 : i32
    return %c0_i32, %c0_i32_0 : i32, i32
  }
  func.func @transform_3(%arg0: i32) -> (i32, i32) {
    %c0_i32 = arith.constant 0 : i32
    %c0_i32_0 = arith.constant 0 : i32
    %c0_i32_1 = arith.constant 0 : i32
    return %c0_i32, %c0_i32_0 : i32, i32
  }
  func.func @transform_4(%arg0: i32) -> (i32, i32) {
    %c0_i32 = arith.constant 0 : i32
    %c0_i32_0 = arith.constant 0 : i32
    %c0_i32_1 = arith.constant 0 : i32
    return %c0_i32, %c0_i32_0 : i32, i32
  }
  func.func @transform_5(%arg0: i32) -> (i32, i32) {
    %c0_i32 = arith.constant 0 : i32
    %c0_i32_0 = arith.constant 0 : i32
    %c0_i32_1 = arith.constant 0 : i32
    return %c0_i32, %c0_i32_0 : i32, i32
  }
  func.func @transform_6(%arg0: i32) -> (i32, i32) {
    %c0_i32 = arith.constant 0 : i32
    %c0_i32_0 = arith.constant 0 : i32
    %c0_i32_1 = arith.constant 0 : i32
    return %c0_i32, %c0_i32_0 : i32, i32
  }
  func.func @transform_7(%arg0: i32) -> (i32, i32) {
    %c0_i32 = arith.constant 0 : i32
    %c0_i32_0 = arith.constant 0 : i32
    %c0_i32_1 = arith.constant 0 : i32
    return %c0_i32, %c0_i32_0 : i32, i32
  }
  func.func @transform_8(%arg0: i32) -> (i32, i32) {
    %c0_i32 = arith.constant 0 : i32
    %c0_i32_0 = arith.constant 0 : i32
    %c0_i32_1 = arith.constant 0 : i32
    return %c0_i32, %c0_i32_0 : i32, i32
  }
  func.func @transform_9(%arg0: i32) -> (i32, i32) {
    %c0_i32 = arith.constant 0 : i32
    %c0_i32_0 = arith.constant 0 : i32
    return %arg0, %c0_i32 : i32, i32
  }
}

</mosaic_0001>

<llo_original>
// kernel: tpu_custom_call.1
$region0: #{tpu_custom_call.1}
  #allocation0 [shape = 'u32[]', space=smem, size = 0x4, offset = 0x4, fixed_abs, tag = 'smem constant byte address 0x4 - core index']
  #allocation1 [shape = 'u32[144,128]{1,0:T(1,128)}', space=vmem, size = 0x12000, scoped, tag = 'internal scratch']
  %s0 = inlined_call_operand.vmem [shape: f32[32,8], index: 0, kind: input, shape index: {}]
  %s1 = inlined_call_operand.vmem [shape: bf16[8,24], index: 1, kind: input, shape index: {}]
  %s2 = inlined_call_operand.vmem [shape: f32[1,24], index: 2, kind: input, shape index: {}]
  %s3 = inlined_call_operand.vmem [shape: bf16[24,24], index: 3, kind: input, shape index: {}]
  %s4 = inlined_call_operand.vmem [shape: f32[1,24], index: 4, kind: input, shape index: {}]
  %s5 = inlined_call_operand.vmem [shape: bf16[24,24], index: 5, kind: input, shape index: {}]
  %s6 = inlined_call_operand.vmem [shape: f32[1,24], index: 6, kind: input, shape index: {}]
  %s7 = inlined_call_operand.vmem [shape: bf16[24,128], index: 7, kind: input, shape index: {}]
  %s8 = inlined_call_operand.vmem [shape: f32[1,128], index: 8, kind: input, shape index: {}]
  %s9 = inlined_call_operand.hbm [shape: f32[32,128], index: 9, kind: output, shape index: {}]
  %s10 = sld [smem:[#allocation0]]
  $region69: #{tpu_custom_call.1} parent=0
    _
  %s12 = ssub.s32 1, %s10
  %s13 = scalar_select 0, %s12, %s10
  $region1: #{tpu_custom_call.1} parent=0
    #allocation2 [shape = 'u8[16384]{0}', space=vmem, size = 0x4000, scoped, tag = 'output window, operand 0']
    #allocation3 [shape = 's32[2]{0}', space=sflag, size = 0x8, scoped, tag = 'scoped memory for tpu_custom_call.1']
    %14 = vsyncpa [#allocation3], 0
    %s15 = scalar_lea.sflag [#allocation3], 1
    %16 = vsyncpa %s15, 0
    loop: start=0, step=1, limit=4
    $region2: #{tpu_custom_call.1} parent=1 // loop_pre_header
      _
    $region3: #{tpu_custom_call.1} parent=1 // loop_header
      %s18 = sphi 0, %s22
      %p19 = scmp.ge.s32.totalorder %s18, 4
      %s28 = sphi 0, %s30
      %s31 = sphi 0, %s28
      %s32 = sphi 0, %s31
      %s48 = sphi 0, %s32
      %s52 = sphi 0, %s52
      %s54 = sphi 0, %s52
      %s55 = sphi 0, %s54
      %s69 = sphi 0, %s55
      %s73 = sphi 0, %s73
      %s75 = sphi 0, %s73
      %s76 = sphi 0, %s75
      %s90 = sphi 0, %s76
      %s94 = sphi 0, %s94
      %s96 = sphi 0, %s94
      %s97 = sphi 0, %s96
      %s111 = sphi 0, %s97
      %s115 = sphi 0, %s115
      %s117 = sphi 0, %s115
      %s118 = sphi 0, %s117
      %s132 = sphi 0, %s118
      %s136 = sphi 0, %s136
      %s138 = sphi 0, %s136
      %s139 = sphi 0, %s138
      %s153 = sphi 0, %s139
      %s157 = sphi 0, %s157
      %s159 = sphi 0, %s157
      %s160 = sphi 0, %s159
      %s174 = sphi 0, %s160
      %s178 = sphi 0, %s178
      %s180 = sphi 0, %s178
      %s181 = sphi 0, %s180
      %s195 = sphi 0, %s181
      %s199 = sphi 0, %s199
      %s201 = sphi 0, %s199
      %s202 = sphi 0, %s201
      %s216 = sphi 0, %s202
      %s222 = sphi 0, %s224
      %s225 = sphi 0, %s222
      %s226 = sphi 0, %s225
      %s242 = sphi 0, %s226
    $region4: #{tpu_custom_call.1} parent=1 // loop_header_branch
      %21 = sbr.rel (%p19) target = $region8
    $region5: #{tpu_custom_call.1} parent=1 // loop_body
      %s23 = ssub.s32 %s18, 1
      %s24 = ssub.s32 %s18, 2
      %s25 = sadd.s32 %s18, 1
      %s26 = ssub.s32 %s18, %s25
      %p27 = scmp.eq.s32.totalorder %s26, 0
      %s29 = sadd.s32 %s28, 1
      %s30 = scalar_select %p27, %s28, %s29
      %p33 = pneg %p27
      %p34 = scmp.eq.s32.totalorder %s18, 1
      %p35 = por %p33, %p34
      %p36 = scmp.ne.s32.totalorder %s28, %s31
      %p37 = scmp.eq.s32.totalorder %s18, 0
      %p38 = por %p36, %p37
      %p39 = scmp.ne.s32.totalorder %s28, %s31
      %p40 = scmp.eq.s32.totalorder %s23, 1
      %p41 = por %p39, %p40
      %p42 = scmp.ne.s32.totalorder %s31, %s32
      %p43 = scmp.eq.s32.totalorder %s23, 0
      %p44 = por %p42, %p43
      %p45 = scmp.ne.s32.totalorder %s31, %s32
      %p46 = scmp.eq.s32.totalorder %s24, 1
      %p47 = por %p45, %p46
      %p49 = scmp.ne.s32.totalorder %s32, %s48
      %p50 = scmp.eq.s32.totalorder %s24, 0
      %p51 = por %p49, %p50
      %s53 = sadd.s32 %s52, 1
      %p56 = scmp.eq.s32.totalorder %s18, 1
      %p57 = scmp.ne.s32.totalorder %s52, %s54
      %p58 = scmp.eq.s32.totalorder %s18, 0
      %p59 = por %p57, %p58
      %p60 = scmp.ne.s32.totalorder %s52, %s54
      %p61 = scmp.eq.s32.totalorder %s23, 1
      %p62 = por %p60, %p61
      %p63 = scmp.ne.s32.totalorder %s54, %s55
      %p64 = scmp.eq.s32.totalorder %s23, 0
      %p65 = por %p63, %p64
      %p66 = scmp.ne.s32.totalorder %s54, %s55
      %p67 = scmp.eq.s32.totalorder %s24, 1
      %p68 = por %p66, %p67
      %p70 = scmp.ne.s32.totalorder %s55, %s69
      %p71 = scmp.eq.s32.totalorder %s24, 0
      %p72 = por %p70, %p71
      %s74 = sadd.s32 %s73, 1
      %p77 = scmp.eq.s32.totalorder %s18, 1
      %p78 = scmp.ne.s32.totalorder %s73, %s75
      %p79 = scmp.eq.s32.totalorder %s18, 0
      %p80 = por %p78, %p79
      %p81 = scmp.ne.s32.totalorder %s73, %s75
      %p82 = scmp.eq.s32.totalorder %s23, 1
      %p83 = por %p81, %p82
      %p84 = scmp.ne.s32.totalorder %s75, %s76
      %p85 = scmp.eq.s32.totalorder %s23, 0
      %p86 = por %p84, %p85
      %p87 = scmp.ne.s32.totalorder %s75, %s76
      %p88 = scmp.eq.s32.totalorder %s24, 1
      %p89 = por %p87, %p88
      %p91 = scmp.ne.s32.totalorder %s76, %s90
      %p92 = scmp.eq.s32.totalorder %s24, 0
      %p93 = por %p91, %p92
      %s95 = sadd.s32 %s94, 1
      %p98 = scmp.eq.s32.totalorder %s18, 1
      %p99 = scmp.ne.s32.totalorder %s94, %s96
      %p100 = scmp.eq.s32.totalorder %s18, 0
      %p101 = por %p99, %p100
      %p102 = scmp.ne.s32.totalorder %s94, %s96
      %p103 = scmp.eq.s32.totalorder %s23, 1
      %p104 = por %p102, %p103
      %p105 = scmp.ne.s32.totalorder %s96, %s97
      %p106 = scmp.eq.s32.totalorder %s23, 0
      %p107 = por %p105, %p106
      %p108 = scmp.ne.s32.totalorder %s96, %s97
      %p109 = scmp.eq.s32.totalorder %s24, 1
      %p110 = por %p108, %p109
      %p112 = scmp.ne.s32.totalorder %s97, %s111
      %p113 = scmp.eq.s32.totalorder %s24, 0
      %p114 = por %p112, %p113
      %s116 = sadd.s32 %s115, 1
      %p119 = scmp.eq.s32.totalorder %s18, 1
      %p120 = scmp.ne.s32.totalorder %s115, %s117
      %p121 = scmp.eq.s32.totalorder %s18, 0
      %p122 = por %p120, %p121
      %p123 = scmp.ne.s32.totalorder %s115, %s117
      %p124 = scmp.eq.s32.totalorder %s23, 1
      %p125 = por %p123, %p124
      %p126 = scmp.ne.s32.totalorder %s117, %s118
      %p127 = scmp.eq.s32.totalorder %s23, 0
      %p128 = por %p126, %p127
      %p129 = scmp.ne.s32.totalorder %s117, %s118
      %p130 = scmp.eq.s32.totalorder %s24, 1
      %p131 = por %p129, %p130
      %p133 = scmp.ne.s32.totalorder %s118, %s132
      %p134 = scmp.eq.s32.totalorder %s24, 0
      %p135 = por %p133, %p134
      %s137 = sadd.s32 %s136, 1
      %p140 = scmp.eq.s32.totalorder %s18, 1
      %p141 = scmp.ne.s32.totalorder %s136, %s138
      %p142 = scmp.eq.s32.totalorder %s18, 0
      %p143 = por %p141, %p142
      %p144 = scmp.ne.s32.totalorder %s136, %s138
      %p145 = scmp.eq.s32.totalorder %s23, 1
      %p146 = por %p144, %p145
      %p147 = scmp.ne.s32.totalorder %s138, %s139
      %p148 = scmp.eq.s32.totalorder %s23, 0
      %p149 = por %p147, %p148
      %p150 = scmp.ne.s32.totalorder %s138, %s139
      %p151 = scmp.eq.s32.totalorder %s24, 1
      %p152 = por %p150, %p151
      %p154 = scmp.ne.s32.totalorder %s139, %s153
      %p155 = scmp.eq.s32.totalorder %s24, 0
      %p156 = por %p154, %p155
      %s158 = sadd.s32 %s157, 1
      %p161 = scmp.eq.s32.totalorder %s18, 1
      %p162 = scmp.ne.s32.totalorder %s157, %s159
      %p163 = scmp.eq.s32.totalorder %s18, 0
      %p164 = por %p162, %p163
      %p165 = scmp.ne.s32.totalorder %s157, %s159
      %p166 = scmp.eq.s32.totalorder %s23, 1
      %p167 = por %p165, %p166
      %p168 = scmp.ne.s32.totalorder %s159, %s160
      %p169 = scmp.eq.s32.totalorder %s23, 0
      %p170 = por %p168, %p169
      %p171 = scmp.ne.s32.totalorder %s159, %s160
      %p172 = scmp.eq.s32.totalorder %s24, 1
      %p173 = por %p171, %p172
      %p175 = scmp.ne.s32.totalorder %s160, %s174
      %p176 = scmp.eq.s32.totalorder %s24, 0
      %p177 = por %p175, %p176
      %s179 = sadd.s32 %s178, 1
      %p182 = scmp.eq.s32.totalorder %s18, 1
      %p183 = scmp.ne.s32.totalorder %s178, %s180
      %p184 = scmp.eq.s32.totalorder %s18, 0
      %p185 = por %p183, %p184
      %p186 = scmp.ne.s32.totalorder %s178, %s180
      %p187 = scmp.eq.s32.totalorder %s23, 1
      %p188 = por %p186, %p187
      %p189 = scmp.ne.s32.totalorder %s180, %s181
      %p190 = scmp.eq.s32.totalorder %s23, 0
      %p191 = por %p189, %p190
      %p192 = scmp.ne.s32.totalorder %s180, %s181
      %p193 = scmp.eq.s32.totalorder %s24, 1
      %p194 = por %p192, %p193
      %p196 = scmp.ne.s32.totalorder %s181, %s195
      %p197 = scmp.eq.s32.totalorder %s24, 0
      %p198 = por %p196, %p197
      %s200 = sadd.s32 %s199, 1
      %p203 = scmp.eq.s32.totalorder %s18, 1
      %p204 = scmp.ne.s32.totalorder %s199, %s201
      %p205 = scmp.eq.s32.totalorder %s18, 0
      %p206 = por %p204, %p205
      %p207 = scmp.ne.s32.totalorder %s199, %s201
      %p208 = scmp.eq.s32.totalorder %s23, 1
      %p209 = por %p207, %p208
      %p210 = scmp.ne.s32.totalorder %s201, %s202
      %p211 = scmp.eq.s32.totalorder %s23, 0
      %p212 = por %p210, %p211
      %p213 = scmp.ne.s32.totalorder %s201, %s202
      %p214 = scmp.eq.s32.totalorder %s24, 1
      %p215 = por %p213, %p214
      %p217 = scmp.ne.s32.totalorder %s202, %s216
      %p218 = scmp.eq.s32.totalorder %s24, 0
      %p219 = por %p217, %p218
      %s220 = ssub.s32 %s18, %s25
      %p221 = scmp.eq.s32.totalorder %s220, 0
      %s223 = sadd.s32 %s222, 1
      %s224 = scalar_select %p221, %s222, %s223
      %p227 = pneg %p221
      %p228 = scmp.eq.s32.totalorder %s18, 1
      %p229 = por %p227, %p228
      %p230 = scmp.ne.s32.totalorder %s222, %s225
      %p231 = scmp.eq.s32.totalorder %s18, 0
      %p232 = por %p230, %p231
      %p233 = scmp.ne.s32.totalorder %s222, %s225
      %p234 = scmp.eq.s32.totalorder %s23, 1
      %p235 = por %p233, %p234
      %p236 = scmp.ne.s32.totalorder %s225, %s226
      %p237 = scmp.eq.s32.totalorder %s23, 0
      %p238 = por %p236, %p237
      %p239 = scmp.ne.s32.totalorder %s225, %s226
      %p240 = scmp.eq.s32.totalorder %s24, 1
      %p241 = por %p239, %p240
      %p243 = scmp.ne.s32.totalorder %s226, %s242
      %p244 = scmp.eq.s32.totalorder %s24, 0
      %p245 = por %p243, %p244
      %p246 = scmp.le.s32.totalorder 1, %s18
      %p247 = scmp.lt.s32.totalorder %s18, 3
      %p248 = pnand %p246, %p247
      %p249 = pneg %p248
      // Predicated region
      $region9: #{tpu_custom_call.1} parent=5 // pred_check
        _
      $region10: #{tpu_custom_call.1} parent=5 // pred_check_branch
        %251 = sbr.rel (%p248) target = $region12
      $region11: #{tpu_custom_call.1} parent=5 // pred_region
        %s252 = ssub.s32 %s18, 1
        // Predicated region
        $region13: #{tpu_custom_call.1} parent=11 // pred_check
          %p253 = pneg %p65
        $region14: #{tpu_custom_call.1} parent=11 // pred_check_branch
          %255 = sbr.rel (%p253) target = $region16
        $region15: #{tpu_custom_call.1} parent=11 // pred_region
          _
        $region16: #{tpu_custom_call.1} parent=11 // pred_fallthru
          _
        // Predicated region
        $region17: #{tpu_custom_call.1} parent=11 // pred_check
          %p256 = pneg %p86
        $region18: #{tpu_custom_call.1} parent=11 // pred_check_branch
          %258 = sbr.rel (%p256) target = $region20
        $region19: #{tpu_custom_call.1} parent=11 // pred_region
          _
        $region20: #{tpu_custom_call.1} parent=11 // pred_fallthru
          _
        // Predicated region
        $region21: #{tpu_custom_call.1} parent=11 // pred_check
          %p259 = pneg %p107
        $region22: #{tpu_custom_call.1} parent=11 // pred_check_branch
          %261 = sbr.rel (%p259) target = $region24
        $region23: #{tpu_custom_call.1} parent=11 // pred_region
          _
        $region24: #{tpu_custom_call.1} parent=11 // pred_fallthru
          _
        // Predicated region
        $region25: #{tpu_custom_call.1} parent=11 // pred_check
          %p262 = pneg %p128
        $region26: #{tpu_custom_call.1} parent=11 // pred_check_branch
          %264 = sbr.rel (%p262) target = $region28
        $region27: #{tpu_custom_call.1} parent=11 // pred_region
          _
        $region28: #{tpu_custom_call.1} parent=11 // pred_fallthru
          _
        // Predicated region
        $region29: #{tpu_custom_call.1} parent=11 // pred_check
          %p265 = pneg %p149
        $region30: #{tpu_custom_call.1} parent=11 // pred_check_branch
          %267 = sbr.rel (%p265) target = $region32
        $region31: #{tpu_custom_call.1} parent=11 // pred_region
          _
        $region32: #{tpu_custom_call.1} parent=11 // pred_fallthru
          _
        // Predicated region
        $region33: #{tpu_custom_call.1} parent=11 // pred_check
          %p268 = pneg %p170
        $region34: #{tpu_custom_call.1} parent=11 // pred_check_branch
          %270 = sbr.rel (%p268) target = $region36
        $region35: #{tpu_custom_call.1} parent=11 // pred_region
          _
        $region36: #{tpu_custom_call.1} parent=11 // pred_fallthru
          _
        // Predicated region
        $region37: #{tpu_custom_call.1} parent=11 // pred_check
          %p271 = pneg %p191
        $region38: #{tpu_custom_call.1} parent=11 // pred_check_branch
          %273 = sbr.rel (%p271) target = $region40
        $region39: #{tpu_custom_call.1} parent=11 // pred_region
          _
        $region40: #{tpu_custom_call.1} parent=11 // pred_fallthru
          _
        // Predicated region
        $region41: #{tpu_custom_call.1} parent=11 // pred_check
          %p274 = pneg %p212
        $region42: #{tpu_custom_call.1} parent=11 // pred_check_branch
          %276 = sbr.rel (%p274) target = $region44
        $region43: #{tpu_custom_call.1} parent=11 // pred_region
          _
        $region44: #{tpu_custom_call.1} parent=11 // pred_fallthru
          _
      $region12: #{tpu_custom_call.1} parent=5 // pred_fallthru
        _
      %p277 = scmp.lt.s32.totalorder %s18, 2
      // Predicated region
      $region45: #{tpu_custom_call.1} parent=5 // pred_check
        %p278 = pneg %p277
      $region46: #{tpu_custom_call.1} parent=5 // pred_check_branch
        %280 = sbr.rel (%p278) target = $region48
      $region47: #{tpu_custom_call.1} parent=5 // pred_region
        // Predicated region
        $region49: #{tpu_custom_call.1} parent=47 // pred_check
          %p281 = pneg %p38
        $region50: #{tpu_custom_call.1} parent=47 // pred_check_branch
          %283 = sbr.rel (%p281) target = $region52
        $region51: #{tpu_custom_call.1} parent=47 // pred_region
          %s284 = smul.u32 2, %s18
          %p285 = scmp.lt.s32.totalorder %s284, 3
          %s286 = scalar_select %p285, %s284, 3
          %s287 = smul.addr %s286, 8
          %s288 = scalar_lea.vmem %s0, %s287
          %s289 = smul.u32 2, %s18
        $region52: #{tpu_custom_call.1} parent=47 // pred_fallthru
          _
      $region48: #{tpu_custom_call.1} parent=5 // pred_fallthru
        _
      %p290 = scmp.le.s32.totalorder 1, %s18
      %p291 = scmp.lt.s32.totalorder %s18, 3
      %p292 = pnand %p290, %p291
      %p293 = pneg %p292
      // Predicated region
      $region53: #{tpu_custom_call.1} parent=5 // pred_check
        _
      $region54: #{tpu_custom_call.1} parent=5 // pred_check_branch
        %295 = sbr.rel (%p292) target = $region56
      $region55: #{tpu_custom_call.1} parent=5 // pred_region
        %s296 = ssub.s32 %s18, 1
        %s297 = smul.u32 2, %s23
        %p298 = scmp.lt.s32.totalorder %s297, 3
        %s299 = scalar_select %p298, %s297, 3
        %s300 = smul.addr %s299, 8
        %s301 = scalar_lea.vmem %s0, %s300
        %p302 = pneg %p44
        %p303 = pneg %p41
        %p304 = pneg %p65
        %p305 = pneg %p62
        %p306 = pneg %p86
        %p307 = pneg %p83
        %p308 = pneg %p107
        %p309 = pneg %p104
        %p310 = pneg %p128
        %p311 = pneg %p125
        %p312 = pneg %p149
        %p313 = pneg %p146
        %p314 = pneg %p170
        %p315 = pneg %p167
        %p316 = pneg %p191
        %p317 = pneg %p188
        %p318 = pneg %p212
        %p319 = pneg %p209
        %p320 = pneg %p238
        %p321 = pneg %p235
        %s322 = sand.u32 %s225, 1
        %s323 = scalar_lea.sflag [#allocation3], %s322
        %s324 = sand.u32 %s225, 1
        %s325 = smul.addr %s324, 16
        %s326 = scalar_lea.vmem [#allocation2], %s325
        %s327 = smul.u32 2, %s23
        %p328 = scmp.lt.s32.totalorder %s327, 3
        %s329 = scalar_select %p328, %s327, 3
        %s330 = smul.addr %s329, 8
        %s331 = scalar_lea.vmem %s0, %s330
        %s332 = smul.u32 2, %s23
        %s333 = smul.u32 2, %s23
        %v335 = vld [vmem:[%s331] sm:$0xff]
        %v336 = vld [vmem:[%s331 + $0x8] sm:$0xff]
        %v337 = vpack.c.bf16 %v336, %v335
        %v338 = vld [vmem:[%s1] sm:$0xf]
        %v339 = vld [vmem:[%s2] sm:$0x1]
        %v341 = vlaneseq
        %v342 = vshrl.u32 %v341, 7
        %v343 = vsub.s32 0, %v342
        %v344 = vrot.slane %v339, %v343
        %vm346 = vcmask 64512
        %v348 = vsel %vm346, %v337, 0
        %vm350 = vcmask 1043456
        %v352 = vsel %vm350, %v338, 0
        %354 = vmatprep.subr.bf16.mxu0 0
        %355 = vmatpush1.bf16.msra.mxu0 %v352
        %356 = vmatprep.subr.bf16.mxu0 0
        %357 = vmatpush1.bf16.msra.mxu0 0
        %358 = vmatprep.subr.bf16.mxu0 0
        %359 = vmatpush1.bf16.msra.mxu0 0
        %360 = vmatprep.subr.bf16.mxu0 0
        %361 = vmatpush1.bf16.msra.mxu0 0
        %362 = vmatprep.subr.bf16.mxu0 0
        %363 = vmatpush1.bf16.msra.mxu0 0
        %364 = vmatprep.subr.bf16.mxu0 0
        %365 = vmatpush1.bf16.msra.mxu0 0
        %366 = vmatprep.subr.bf16.mxu0 0
        %367 = vmatpush1.bf16.msra.mxu0 0
        %368 = vmatprep.subr.bf16.mxu0 0
        %369 = vmatpush1.bf16.msra.mxu0 0
        %370 = vmatprep.subr.bf16.mxu0 0
        %371 = vmatpush1.bf16.msra.mxu0 0
        %372 = vmatprep.subr.bf16.mxu0 0
        %373 = vmatpush1.bf16.msra.mxu0 0
        %374 = vmatprep.subr.bf16.mxu0 0
        %375 = vmatpush1.bf16.msra.mxu0 0
        %376 = vmatprep.subr.bf16.mxu0 0
        %377 = vmatpush1.bf16.msra.mxu0 0
        %378 = vmatprep.subr.bf16.mxu0 0
        %379 = vmatpush1.bf16.msra.mxu0 0
        %380 = vmatprep.subr.bf16.mxu0 0
        %381 = vmatpush1.bf16.msra.mxu0 0
        %382 = vmatprep.subr.bf16.mxu0 0
        %383 = vmatpush1.bf16.msra.mxu0 0
        %384 = vmatprep.subr.bf16.mxu0 0
        %385 = vmatpush1.bf16.msra.mxu0 0
        %386 = vmatprep.mubr.bf16.mxu0 0
        %387 = vmatmul.mubr.bf16.gmra.mrb[0].mxu0 %v348
        %v388 = vpop.f32.mrb[0].mxu0
        %v389 = vadd.f32 %v344, %v388
        %v390 = vpop.f32.mrb[0].mxu0
        %v391 = vpop.f32.mrb[0].mxu0
        %v392 = vadd.f32 %v344, %v391
        %v393 = vpop.f32.mrb[0].mxu0
        %394 = vdwg.mxu0
        %vm395 = vcmp.gt.f32.partialorder %v389, 0.0
        %vm396 = vcmp.gt.f32.partialorder %v392, 0.0
        %v397 = vmul.f32 %v389, 0.01
        %v398 = vmul.f32 %v392, 0.01
        %v399 = vsel %vm395, %v389, %v397
        %v400 = vsel %vm396, %v392, %v398
        %v401 = vpack.c.bf16 %v400, %v399
        %v402 = vld [vmem:[%s3] sm:$0xf]
        %v403 = vld [vmem:[%s3 + $0x4] sm:$0xf]
        %v404 = vld [vmem:[%s3 + $0x8] sm:$0xf]
        %v405 = vld [vmem:[%s4] sm:$0x1]
        %v407 = vlaneseq
        %v408 = vshrl.u32 %v407, 7
        %v409 = vsub.s32 0, %v408
        %v410 = vrot.slane %v405, %v409
        %v415 = vunpack.c.l.b16 %v402
        %v416 = vunpack.c.l.b16 %v403
        %v417 = vunpack.c.l.b16 %v404
        %v418 = vpack.c.b16 %v416, %v415
        %v419 = vpack.c.b16 %v417, %v417
        %vm421 = vcmask 195584
        %v423 = vsel %vm421, %v401, 0
        %v426 = vsel %vm350, %v419, 0
        %428 = vmatprep.subr.bf16.mxu0 0
        %429 = vmatpush1.bf16.msra.mxu0 %v418
        %430 = vmatprep.subr.bf16.mxu0 0
        %431 = vmatpush1.bf16.msra.mxu0 %v426
        %432 = vmatprep.subr.bf16.mxu0 0
        %433 = vmatpush1.bf16.msra.mxu0 0
        %434 = vmatprep.subr.bf16.mxu0 0
        %435 = vmatpush1.bf16.msra.mxu0 0
        %436 = vmatprep.subr.bf16.mxu0 0
        %437 = vmatpush1.bf16.msra.mxu0 0
        %438 = vmatprep.subr.bf16.mxu0 0
        %439 = vmatpush1.bf16.msra.mxu0 0
        %440 = vmatprep.subr.bf16.mxu0 0
        %441 = vmatpush1.bf16.msra.mxu0 0
        %442 = vmatprep.subr.bf16.mxu0 0
        %443 = vmatpush1.bf16.msra.mxu0 0
        %444 = vmatprep.subr.bf16.mxu0 0
        %445 = vmatpush1.bf16.msra.mxu0 0
        %446 = vmatprep.subr.bf16.mxu0 0
        %447 = vmatpush1.bf16.msra.mxu0 0
        %448 = vmatprep.subr.bf16.mxu0 0
        %449 = vmatpush1.bf16.msra.mxu0 0
        %450 = vmatprep.subr.bf16.mxu0 0
        %451 = vmatpush1.bf16.msra.mxu0 0
        %452 = vmatprep.subr.bf16.mxu0 0
        %453 = vmatpush1.bf16.msra.mxu0 0
        %454 = vmatprep.subr.bf16.mxu0 0
        %455 = vmatpush1.bf16.msra.mxu0 0
        %456 = vmatprep.subr.bf16.mxu0 0
        %457 = vmatpush1.bf16.msra.mxu0 0
        %458 = vmatprep.subr.bf16.mxu0 0
        %459 = vmatpush1.bf16.msra.mxu0 0
        %460 = vmatprep.mubr.bf16.mxu0 0
        %461 = vmatmul.mubr.bf16.gmra.mrb[0].mxu0 %v423
        %v462 = vpop.f32.mrb[0].mxu0
        %v463 = vadd.f32 %v410, %v462
        %v464 = vpop.f32.mrb[0].mxu0
        %v465 = vpop.f32.mrb[0].mxu0
        %v466 = vadd.f32 %v410, %v465
        %v467 = vpop.f32.mrb[0].mxu0
        %468 = vdwg.mxu0
        %vm469 = vcmp.gt.f32.partialorder %v463, 0.0
        %vm470 = vcmp.gt.f32.partialorder %v466, 0.0
        %v471 = vmul.f32 %v463, 0.01
        %v472 = vmul.f32 %v466, 0.01
        %v473 = vsel %vm469, %v463, %v471
        %v474 = vsel %vm470, %v466, %v472
        %v475 = vpack.c.bf16 %v474, %v473
        %v476 = vld [vmem:[%s5] sm:$0xf]
        %v477 = vld [vmem:[%s5 + $0x4] sm:$0xf]
        %v478 = vld [vmem:[%s5 + $0x8] sm:$0xf]
        %v479 = vld [vmem:[%s6] sm:$0x1]
        %v481 = vlaneseq
        %v482 = vshrl.u32 %v481, 7
        %v483 = vsub.s32 0, %v482
        %v484 = vrot.slane %v479, %v483
        %v489 = vunpack.c.l.b16 %v476
        %v490 = vunpack.c.l.b16 %v477
        %v491 = vunpack.c.l.b16 %v478
        %v492 = vpack.c.b16 %v490, %v489
        %v493 = vpack.c.b16 %v491, %v491
        %v496 = vsel %vm421, %v475, 0
        %v499 = vsel %vm350, %v493, 0
        %501 = vmatprep.subr.bf16.mxu0 0
        %502 = vmatpush1.bf16.msra.mxu0 %v492
        %503 = vmatprep.subr.bf16.mxu0 0
        %504 = vmatpush1.bf16.msra.mxu0 %v499
        %505 = vmatprep.subr.bf16.mxu0 0
        %506 = vmatpush1.bf16.msra.mxu0 0
        %507 = vmatprep.subr.bf16.mxu0 0
        %508 = vmatpush1.bf16.msra.mxu0 0
        %509 = vmatprep.subr.bf16.mxu0 0
        %510 = vmatpush1.bf16.msra.mxu0 0
        %511 = vmatprep.subr.bf16.mxu0 0
        %512 = vmatpush1.bf16.msra.mxu0 0
        %513 = vmatprep.subr.bf16.mxu0 0
        %514 = vmatpush1.bf16.msra.mxu0 0
        %515 = vmatprep.subr.bf16.mxu0 0
        %516 = vmatpush1.bf16.msra.mxu0 0
        %517 = vmatprep.subr.bf16.mxu0 0
        %518 = vmatpush1.bf16.msra.mxu0 0
        %519 = vmatprep.subr.bf16.mxu0 0
        %520 = vmatpush1.bf16.msra.mxu0 0
        %521 = vmatprep.subr.bf16.mxu0 0
        %522 = vmatpush1.bf16.msra.mxu0 0
        %523 = vmatprep.subr.bf16.mxu0 0
        %524 = vmatpush1.bf16.msra.mxu0 0
        %525 = vmatprep.subr.bf16.mxu0 0
        %526 = vmatpush1.bf16.msra.mxu0 0
        %527 = vmatprep.subr.bf16.mxu0 0
        %528 = vmatpush1.bf16.msra.mxu0 0
        %529 = vmatprep.subr.bf16.mxu0 0
        %530 = vmatpush1.bf16.msra.mxu0 0
        %531 = vmatprep.subr.bf16.mxu0 0
        %532 = vmatpush1.bf16.msra.mxu0 0
        %533 = vmatprep.mubr.bf16.mxu0 0
        %534 = vmatmul.mubr.bf16.gmra.mrb[0].mxu0 %v496
        %v535 = vpop.f32.mrb[0].mxu0
        %v536 = vadd.f32 %v484, %v535
        %v537 = vpop.f32.mrb[0].mxu0
        %v538 = vpop.f32.mrb[0].mxu0
        %v539 = vadd.f32 %v484, %v538
        %v540 = vpop.f32.mrb[0].mxu0
        %541 = vdwg.mxu0
        %vm542 = vcmp.gt.f32.partialorder %v536, 0.0
        %vm543 = vcmp.gt.f32.partialorder %v539, 0.0
        %v544 = vmul.f32 %v536, 0.01
        %v545 = vmul.f32 %v539, 0.01
        %v546 = vsel %vm542, %v536, %v544
        %v547 = vsel %vm543, %v539, %v545
        %v548 = vpack.c.bf16 %v547, %v546
        %v549 = vld [vmem:[%s7] sm:$0xf]
        %v550 = vld [vmem:[%s7 + $0x4] sm:$0xf]
        %v551 = vld [vmem:[%s7 + $0x8] sm:$0xf]
        %v552 = vld [vmem:[%s8] sm:$0x1]
        %v554 = vlaneseq
        %v555 = vshrl.u32 %v554, 7
        %v556 = vsub.s32 0, %v555
        %v557 = vrot.slane %v552, %v556
        %v562 = vunpack.c.l.b16 %v549
        %v563 = vunpack.c.l.b16 %v550
        %v564 = vunpack.c.l.b16 %v551
        %v565 = vpack.c.b16 %v563, %v562
        %v566 = vpack.c.b16 %v564, %v564
        %v569 = vsel %vm421, %v548, 0
        %v572 = vsel %vm350, %v566, 0
        %574 = vmatprep.subr.bf16.mxu0 0
        %575 = vmatpush1.bf16.msra.mxu0 %v565
        %576 = vmatprep.subr.bf16.mxu0 0
        %577 = vmatpush1.bf16.msra.mxu0 %v572
        %578 = vmatprep.subr.bf16.mxu0 0
        %579 = vmatpush1.bf16.msra.mxu0 0
        %580 = vmatprep.subr.bf16.mxu0 0
        %581 = vmatpush1.bf16.msra.mxu0 0
        %582 = vmatprep.subr.bf16.mxu0 0
        %583 = vmatpush1.bf16.msra.mxu0 0
        %584 = vmatprep.subr.bf16.mxu0 0
        %585 = vmatpush1.bf16.msra.mxu0 0
        %586 = vmatprep.subr.bf16.mxu0 0
        %587 = vmatpush1.bf16.msra.mxu0 0
        %588 = vmatprep.subr.bf16.mxu0 0
        %589 = vmatpush1.bf16.msra.mxu0 0
        %590 = vmatprep.subr.bf16.mxu0 0
        %591 = vmatpush1.bf16.msra.mxu0 0
        %592 = vmatprep.subr.bf16.mxu0 0
        %593 = vmatpush1.bf16.msra.mxu0 0
        %594 = vmatprep.subr.bf16.mxu0 0
        %595 = vmatpush1.bf16.msra.mxu0 0
        %596 = vmatprep.subr.bf16.mxu0 0
        %597 = vmatpush1.bf16.msra.mxu0 0
        %598 = vmatprep.subr.bf16.mxu0 0
        %599 = vmatpush1.bf16.msra.mxu0 0
        %600 = vmatprep.subr.bf16.mxu0 0
        %601 = vmatpush1.bf16.msra.mxu0 0
        %602 = vmatprep.subr.bf16.mxu0 0
        %603 = vmatpush1.bf16.msra.mxu0 0
        %604 = vmatprep.subr.bf16.mxu0 0
        %605 = vmatpush1.bf16.msra.mxu0 0
        %606 = vmatprep.mubr.bf16.mxu0 0
        %607 = vmatmul.mubr.bf16.gmra.mrb[0].mxu0 %v569
        %v608 = vpop.f32.mrb[0].mxu0
        %v609 = vadd.f32 %v557, %v608
        %v610 = vpop.f32.mrb[0].mxu0
        %v611 = vpop.f32.mrb[0].mxu0
        %v612 = vadd.f32 %v557, %v611
        %v613 = vpop.f32.mrb[0].mxu0
        %614 = vdwg.mxu0
        %615 = vst [vmem:[%s326] sm:$0xff] %v609
        %616 = vst [vmem:[%s326 + $0x8] sm:$0xff] %v612
        %s617 = sand.u32 %s225, 1
        %s618 = scalar_lea.sflag [#allocation3], %s617
        %s619 = sand.u32 %s225, 1
        %s620 = smul.addr %s619, 16
        %s621 = scalar_lea.vmem [#allocation2], %s620
        // Predicated region
        $region57: #{tpu_custom_call.1} parent=55 // pred_check
          %p622 = pneg %p235
        $region58: #{tpu_custom_call.1} parent=55 // pred_check_branch
          %624 = sbr.rel (%p622) target = $region60
        $region59: #{tpu_custom_call.1} parent=55 // pred_region
          %s625 = smul.u32 2, %s23
          %s627 = ssub.s32 256, 256
          %628 = vsyncadd %s618, %s627
          %s629 = smul.addr %s625, 128
          %s630 = scalar_lea.hbm %s9, %s629
          %s631 = sshll.u32 %s621, 4
          %s632 = int_to_ptr.vmem [resolvable:$true] %s631
          %637 = dma.vmem_to_hbm [thread:$0]  %s632, 256, %s630, %s618, 128, 128, 8
        $region60: #{tpu_custom_call.1} parent=55 // pred_fallthru
          _
      $region56: #{tpu_custom_call.1} parent=5 // pred_fallthru
        _
      %p638 = scmp.le.s32.totalorder 2, %s18
      // Predicated region
      $region61: #{tpu_custom_call.1} parent=5 // pred_check
        %p639 = pneg %p638
      $region62: #{tpu_custom_call.1} parent=5 // pred_check_branch
        %641 = sbr.rel (%p639) target = $region64
      $region63: #{tpu_custom_call.1} parent=5 // pred_region
        %s642 = ssub.s32 %s18, 2
        // Predicated region
        $region65: #{tpu_custom_call.1} parent=63 // pred_check
          %p643 = pneg %p241
        $region66: #{tpu_custom_call.1} parent=63 // pred_check_branch
          %645 = sbr.rel (%p643) target = $region68
        $region67: #{tpu_custom_call.1} parent=63 // pred_region
          %s646 = sand.u32 %s226, 1
          %s647 = scalar_lea.sflag [#allocation3], %s646
          %s648 = sand.u32 %s226, 1
          %s649 = smul.addr %s648, 16
          %s650 = scalar_lea.vmem [#allocation2], %s649
          %651 = dma.done %s647, 256
        $region68: #{tpu_custom_call.1} parent=63 // pred_fallthru
          _
      $region64: #{tpu_custom_call.1} parent=5 // pred_fallthru
        _
    $region6: #{tpu_custom_call.1} parent=1 // loop_footer
      %s22 = sadd.s32 1, %s18
    $region7: #{tpu_custom_call.1} parent=1 // loop_footer_branch
      %17 = sbr.rel target = $region3
    $region8: #{tpu_custom_call.1} parent=1 // loop_exit
      _
    %652 = vsyncpa [#allocation3], 1
    %s653 = scalar_lea.sflag [#allocation3], 1
    %654 = vsyncpa %s653, 1

</llo_original>
